<compile_context>
chip_gen: v6e
topology: v6e:2x2x1
jax: 0.10.0
libtpu: 0.0.40
codegen_flags: <defaults>
</compile_context>

<pallas_src>
import jax
import jax.numpy as jnp
from jax.experimental import pallas as pl
from jax.experimental.pallas import tpu as pltpu


def _ia_gate_kernel(head_ref, w_ref, bias_ref, x_ref, o_ref, gate_ref):
    # head_ref: [B, in_dim]      resident (constant index map, fetched once)
    # w_ref:    [in_dim, TC]     current channel-tile of the weight
    # bias_ref: [1, TC]          current channel-tile of the bias
    # x_ref:    [1, TC, THW]     current (batch, channel, spatial) tile of x
    # o_ref:    [1, TC, THW]
    # gate_ref: [1, TC] f32 VMEM scratch (persists across grid steps)

    # Program ids are read at the TOP LEVEL of the body (never inside pl.when)
    # so they are always substituted correctly by the pipeline/interpreter.
    bi = pl.program_id(0)
    spatial_step = pl.program_id(2)

    # Compute the gate once per (batch, channel-tile); spatial steps reuse it.
    @pl.when(spatial_step == 0)
    def _():
        head_row = head_ref[pl.ds(bi, 1), :]                           # [1, in_dim]
        a = jnp.dot(head_row, w_ref[...], preferred_element_type=jnp.float32)
        gate_ref[...] = 1.0 + jnp.tanh(a + bias_ref[...])              # [1, TC]

    # Steady state: pure broadcast multiply (VPU), HBM-bandwidth bound.
    o_ref[...] = (gate_ref[...][:, :, None] * x_ref[...]).astype(o_ref.dtype)


def _largest_tile(total, base, cap):
    """Largest divisor of `total` that is a multiple of `base` and <= cap.
    Falls back to `total` (full extent) if no such divisor exists."""
    cap = max(cap, base)
    best = None
    t = base
    while t <= min(total, cap):
        if total % t == 0:
            best = t
        t += base
    return best if best is not None else total


def ia_gate(x, ia_head, weight, bias):
    """x: [B, C, H, W] (NCHW), ia_head: [B, in_dim],
    weight: [in_dim, out_dim], bias: [out_dim]."""
    B, C, H, W = x.shape
    in_dim, out_dim = weight.shape
    assert C == out_dim
    HW = H * W

    x_flat = x.reshape(B, C, HW)
    bias2d = bias.reshape(1, out_dim)
    itemsize = x.dtype.itemsize

    # Channel tile: multiple of 128 (keeps weight/bias lane dim aligned) or the
    # full channel extent for small C.
    TC = _largest_tile(C, 128, 256)
    # Spatial tile: lane-dense multiple of 128, capped so one x block is about
    # <= 2 MiB (safe for v7x's scoped VMEM with in+out double buffering, large
    # enough to amortize per-step overhead on v5e/v6e).
    max_lanes = max(128, (2 * 1024 * 1024) // (TC * itemsize))
    THW = _largest_tile(HW, 128, max_lanes)

    grid = (B, C // TC, HW // THW)

    cost = pl.CostEstimate(
        flops=2 * B * in_dim * out_dim + B * C * HW,
        transcendentals=B * out_dim,
        bytes_accessed=2 * B * C * HW * itemsize
        + (B * in_dim + in_dim * out_dim + out_dim) * itemsize,
    )

    out = pl.pallas_call(
        _ia_gate_kernel,
        out_shape=jax.ShapeDtypeStruct((B, C, HW), x.dtype),
        grid_spec=pltpu.PrefetchScalarGridSpec(
            num_scalar_prefetch=0,
            grid=grid,
            in_specs=[
                pl.BlockSpec((B, in_dim), lambda b, c, s: (0, 0)),      # resident
                pl.BlockSpec((in_dim, TC), lambda b, c, s: (0, c)),     # per-c tile
                pl.BlockSpec((1, TC), lambda b, c, s: (0, c)),          # per-c tile
                pl.BlockSpec((1, TC, THW), lambda b, c, s: (b, c, s)),  # x tile
            ],
            out_specs=pl.BlockSpec((1, TC, THW), lambda b, c, s: (b, c, s)),
            scratch_shapes=[pltpu.VMEM((1, TC), jnp.float32)],
        ),
        compiler_params=pltpu.CompilerParams(
            dimension_semantics=("parallel", "parallel", "arbitrary"),
        ),
        input_output_aliases={3: 0},   # gate x in place (no second HBM buffer)
        cost_estimate=cost,
    )(ia_head, weight, bias2d, x_flat)

    return out.reshape(B, C, H, W)


def reference(x, ia_head, weight, bias):
    a = ia_head @ weight + bias
    a = 1.0 + jnp.tanh(a)
    return a[:, :, None, None] * x


if __name__ == "__main__":
    key = jax.random.PRNGKey(0)
    B, in_dim, out_dim, Hs, Ws = 2, 8, 4, 16, 16

    k1, k2, k3, k4 = jax.random.split(key, 4)
    x = jax.random.normal(k1, (B, out_dim, Hs, Ws), dtype=jnp.float32)
    ia_head = jax.random.normal(k2, (B, in_dim), dtype=jnp.float32)
    # Deterministic "Linear" params (uniform in [-1/sqrt(in_dim), 1/sqrt(in_dim)])
    bound = 1.0 / (in_dim ** 0.5)
    weight = jax.random.uniform(k3, (in_dim, out_dim), minval=-bound, maxval=bound,
                                dtype=jnp.float32)
    bias = jax.random.uniform(k4, (out_dim,), minval=-bound, maxval=bound,
                              dtype=jnp.float32)

    # Compute the reference first (the kernel aliases its flattened-x operand).
    ref = reference(x, ia_head, weight, bias)
    ref = jax.block_until_ready(ref)

    out = ia_gate(x, ia_head, weight, bias)
    out = jax.block_until_ready(out)

    assert jnp.allclose(out, ref, atol=1e-5, rtol=1e-5), "mismatch vs reference"
    print("KERNEL_OK")
</pallas_src>

<mosaic_0001>
module attributes {stable_mosaic.version = 11 : i64} {
  func.func @_ia_gate_kernel(%arg0: i32, %arg1: i32, %arg2: i32, %arg3: memref<2x8xf32, #tpu.memory_space<vmem>>, %arg4: memref<8x4xf32, #tpu.memory_space<vmem>>, %arg5: memref<1x4xf32, #tpu.memory_space<vmem>>, %arg6: memref<1x4x256xf32, #tpu.memory_space<vmem>>, %arg7: memref<1x4x256xf32, #tpu.memory_space<vmem>>, %arg8: memref<1x4xf32, #tpu.memory_space<vmem>>) attributes {dimension_semantics = [#tpu.dimension_semantics<parallel>, #tpu.dimension_semantics<parallel>, #tpu.dimension_semantics<arbitrary>], iteration_bounds = array<i64: 2, 1, 1>, scalar_prefetch = 0 : i64, scratch_operands = 1 : i64, tpu.core_type = #tpu.core_type<tc>, window_params = [{pipeline_mode = #tpu.pipeline_mode<synchronous>, transform_indices = @transform_0, window_bounds = array<i64: 2, 8>}, {transform_indices = @transform_1, window_bounds = array<i64: 8, 4>}, {transform_indices = @transform_2, window_bounds = array<i64: 1, 4>}, {transform_indices = @transform_3, window_bounds = array<i64: 1, 4, 256>}, {transform_indices = @transform_4, window_bounds = array<i64: 1, 4, 256>}]} {
    %c0_i32 = arith.constant 0 : i32
    %0 = arith.cmpi eq, %arg2, %c0_i32 : i32
    %1 = arith.extui %0 : i1 to i32
    %c0_i32_0 = arith.constant 0 : i32
    %2 = arith.cmpi ne, %1, %c0_i32_0 : i32
    scf.if %2 {
      %9 = arith.index_cast %arg0 : i32 to index
      %c0_8 = arith.constant 0 : index
      %10 = vector.load %arg3[%9, %c0_8] : memref<2x8xf32, #tpu.memory_space<vmem>>, vector<1x8xf32>
      %c0_9 = arith.constant 0 : index
      %c0_10 = arith.constant 0 : index
      %11 = vector.load %arg4[%c0_9, %c0_10] : memref<8x4xf32, #tpu.memory_space<vmem>>, vector<8x4xf32>
      %cst = arith.constant dense<0.000000e+00> : vector<1x4xf32>
      %12 = tpu.matmul %10, %11, %cst {dimension_numbers = #tpu.dot_dimension_numbers<[1], [0], [0], [1], [0, 0, 1, 1], [], []>} : vector<1x8xf32>, vector<8x4xf32>, vector<1x4xf32> -> vector<1x4xf32>
      %c0_11 = arith.constant 0 : index
      %c0_12 = arith.constant 0 : index
      %13 = vector.load %arg5[%c0_11, %c0_12] : memref<1x4xf32, #tpu.memory_space<vmem>>, vector<1x4xf32>
      %14 = arith.addf %12, %13 : vector<1x4xf32>
      %15 = math.tanh %14 : vector<1x4xf32>
      %cst_13 = arith.constant 1.000000e+00 : f32
      %16 = vector.broadcast %cst_13 : f32 to vector<1x4xf32>
      %17 = arith.addf %16, %15 : vector<1x4xf32>
      %c0_14 = arith.constant 0 : index
      %c0_15 = arith.constant 0 : index
      %18 = vector.load %arg8[%c0_14, %c0_15] : memref<1x4xf32, #tpu.memory_space<vmem>>, vector<1x4xf32>
      tpu.vector_store %arg8[%c0_14, %c0_15], %17 {strides = array<i32>} : memref<1x4xf32, #tpu.memory_space<vmem>>, vector<1x4xf32>,
    } else {
    }
    %c0 = arith.constant 0 : index
    %c0_1 = arith.constant 0 : index
    %3 = vector.load %arg8[%c0, %c0_1] : memref<1x4xf32, #tpu.memory_space<vmem>>, vector<1x4xf32>
    %4 = vector.shape_cast %3 : vector<1x4xf32> to vector<1x4x1xf32>
    %c0_2 = arith.constant 0 : index
    %c0_3 = arith.constant 0 : index
    %c0_4 = arith.constant 0 : index
    %5 = vector.load %arg6[%c0_2, %c0_3, %c0_4] : memref<1x4x256xf32, #tpu.memory_space<vmem>>, vector<1x4x256xf32>
    %6 = vector.broadcast %4 : vector<1x4x1xf32> to vector<1x4x256xf32>
    %7 = arith.mulf %6, %5 : vector<1x4x256xf32>
    %c0_5 = arith.constant 0 : index
    %c0_6 = arith.constant 0 : index
    %c0_7 = arith.constant 0 : index
    %8 = vector.load %arg7[%c0_5, %c0_6, %c0_7] : memref<1x4x256xf32, #tpu.memory_space<vmem>>, vector<1x4x256xf32>
    tpu.vector_store %arg7[%c0_5, %c0_6, %c0_7], %7 {strides = array<i32>} : memref<1x4x256xf32, #tpu.memory_space<vmem>>, vector<1x4x256xf32>,
    return
  }
  func.func @transform_0(%arg0: i32, %arg1: i32, %arg2: i32) -> (i32, i32) {
    %c0_i32 = arith.constant 0 : i32
    %c0_i32_0 = arith.constant 0 : i32
    %c0_i32_1 = arith.constant 0 : i32
    return %c0_i32, %c0_i32_0 : i32, i32
  }
  func.func @transform_1(%arg0: i32, %arg1: i32, %arg2: i32) -> (i32, i32) {
    %c0_i32 = arith.constant 0 : i32
    %c0_i32_0 = arith.constant 0 : i32
    return %c0_i32, %arg1 : i32, i32
  }
  func.func @transform_2(%arg0: i32, %arg1: i32, %arg2: i32) -> (i32, i32) {
    %c0_i32 = arith.constant 0 : i32
    %c0_i32_0 = arith.constant 0 : i32
    return %c0_i32, %arg1 : i32, i32
  }
  func.func @transform_3(%arg0: i32, %arg1: i32, %arg2: i32) -> (i32, i32, i32) {
    %c0_i32 = arith.constant 0 : i32
    return %arg0, %arg1, %arg2 : i32, i32, i32
  }
  func.func @transform_4(%arg0: i32, %arg1: i32, %arg2: i32) -> (i32, i32, i32) {
    %c0_i32 = arith.constant 0 : i32
    return %arg0, %arg1, %arg2 : i32, i32, i32
  }
}

</mosaic_0001>

<llo_original>
// kernel: tpu_custom_call.1
$region0: #{tpu_custom_call.1}
  #allocation0 [shape = 'u32[]', space=smem, size = 0x4, offset = 0x4, fixed_abs, tag = 'smem constant byte address 0x4 - core index']
  #allocation1 [shape = 'u32[144,128]{1,0:T(1,128)}', space=vmem, size = 0x12000, scoped, tag = 'internal scratch']
  #allocation2 [shape = 'f32[1,4]{1,0:T(1,128)}', space=vmem, size = 0x200, scoped, tag = 'scratch operand']
  %s0 = inlined_call_operand.vmem [shape: f32[2,8], index: 0, kind: input, shape index: {}]
  %s1 = inlined_call_operand.vmem [shape: f32[8,4], index: 1, kind: input, shape index: {}]
  %s2 = inlined_call_operand.vmem [shape: f32[1,4], index: 2, kind: input, shape index: {}]
  %s3 = inlined_call_operand.hbm [shape: f32[2,4,256], index: 3, kind: input, shape index: {}, may-alias: {3,4}]
  %s4 = inlined_call_operand.hbm [shape: f32[2,4,256], index: 4, kind: output, shape index: {}, may-alias: {3,4}]
  %s5 = sld [smem:[#allocation0]]
  $region57: #{tpu_custom_call.1} parent=0
    _
  %s7 = ssub.s32 1, %s5
  %s8 = scalar_select 0, %s7, %s5
  $region1: #{tpu_custom_call.1} parent=0
    #allocation3 [shape = 'u8[8192]{0}', space=vmem, size = 0x2000, scoped, tag = 'input window, operand 3']
    #allocation4 [shape = 's32[2]{0}', space=sflag, size = 0x8, scoped, tag = 'scoped memory for tpu_custom_call.1']
    #allocation5 [shape = 's32[2]{0}', space=sflag, size = 0x8, scoped, tag = 'scoped memory for tpu_custom_call.1']
    #allocation6 [shape = 'u8[8192]{0}', space=vmem, size = 0x2000, scoped, tag = 'output window, operand 0']
    %9 = vsyncpa [#allocation4], 0
    %s10 = scalar_lea.sflag [#allocation4], 1
    %11 = vsyncpa %s10, 0
    %12 = vsyncpa [#allocation5], 0
    %s13 = scalar_lea.sflag [#allocation5], 1
    %14 = vsyncpa %s13, 0
    loop: start=0, step=1, limit=4
    $region2: #{tpu_custom_call.1} parent=1 // loop_pre_header
      _
    $region3: #{tpu_custom_call.1} parent=1 // loop_header
      %s16 = sphi 0, %s20
      %p17 = scmp.ge.s32.totalorder %s16, 4
      %s23 = sphi 0, %s42
      %s24 = sphi 0, %s38
      %s25 = sphi 0, %s34
      %s26 = sphi 0, %s23
      %s27 = sphi 0, %s24
      %s28 = sphi 0, %s25
      %s29 = sphi 0, %s26
      %s30 = sphi 0, %s27
      %s31 = sphi 0, %s28
      %s43 = sphi 0, %s43
      %s45 = sphi 0, %s43
      %s46 = sphi 0, %s45
      %s60 = sphi 0, %s46
      %s66 = sphi 0, %s68
      %s69 = sphi 0, %s66
      %s70 = sphi 0, %s69
      %s86 = sphi 0, %s70
      %s92 = sphi 0, %s94
      %s95 = sphi 0, %s92
      %s96 = sphi 0, %s95
      %s112 = sphi 0, %s96
      %s122 = sphi 0, %s124
      %s125 = sphi 0, %s122
      %s126 = sphi 0, %s125
      %s142 = sphi 0, %s126
      %s152 = sphi 0, %s154
      %s155 = sphi 0, %s152
      %s156 = sphi 0, %s155
      %s172 = sphi 0, %s156
    $region4: #{tpu_custom_call.1} parent=1 // loop_header_branch
      %19 = sbr.rel (%p17) target = $region8
    $region5: #{tpu_custom_call.1} parent=1 // loop_body
      %s21 = ssub.s32 %s16, 1
      %s22 = ssub.s32 %s16, 2
      %s32 = sadd.s32 1, %s25
      %p33 = scmp.ge.s32.totalorder %s32, 1
      %s34 = scalar_select %p33, 0, %s32
      %s35 = sadd.s32 1, %s24
      %s36 = scalar_select %p33, %s35, %s24
      %p37 = scmp.ge.s32.totalorder %s36, 1
      %s38 = scalar_select %p37, 0, %s36
      %s39 = sadd.s32 1, %s23
      %s40 = scalar_select %p37, %s39, %s23
      %p41 = scmp.ge.s32.totalorder %s40, 2
      %s42 = scalar_select %p41, 0, %s40
      %s44 = sadd.s32 %s43, 1
      %p47 = scmp.eq.s32.totalorder %s16, 1
      %p48 = scmp.ne.s32.totalorder %s43, %s45
      %p49 = scmp.eq.s32.totalorder %s16, 0
      %p50 = por %p48, %p49
      %p51 = scmp.ne.s32.totalorder %s43, %s45
      %p52 = scmp.eq.s32.totalorder %s21, 1
      %p53 = por %p51, %p52
      %p54 = scmp.ne.s32.totalorder %s45, %s46
      %p55 = scmp.eq.s32.totalorder %s21, 0
      %p56 = por %p54, %p55
      %p57 = scmp.ne.s32.totalorder %s45, %s46
      %p58 = scmp.eq.s32.totalorder %s22, 1
      %p59 = por %p57, %p58
      %p61 = scmp.ne.s32.totalorder %s46, %s60
      %p62 = scmp.eq.s32.totalorder %s22, 0
      %p63 = por %p61, %p62
      %s64 = ssub.s32 %s24, %s38
      %p65 = scmp.eq.s32.totalorder %s64, 0
      %s67 = sadd.s32 %s66, 1
      %s68 = scalar_select %p65, %s66, %s67
      %p71 = pneg %p65
      %p72 = scmp.eq.s32.totalorder %s16, 1
      %p73 = por %p71, %p72
      %p74 = scmp.ne.s32.totalorder %s66, %s69
      %p75 = scmp.eq.s32.totalorder %s16, 0
      %p76 = por %p74, %p75
      %p77 = scmp.ne.s32.totalorder %s66, %s69
      %p78 = scmp.eq.s32.totalorder %s21, 1
      %p79 = por %p77, %p78
      %p80 = scmp.ne.s32.totalorder %s69, %s70
      %p81 = scmp.eq.s32.totalorder %s21, 0
      %p82 = por %p80, %p81
      %p83 = scmp.ne.s32.totalorder %s69, %s70
      %p84 = scmp.eq.s32.totalorder %s22, 1
      %p85 = por %p83, %p84
      %p87 = scmp.ne.s32.totalorder %s70, %s86
      %p88 = scmp.eq.s32.totalorder %s22, 0
      %p89 = por %p87, %p88
      %s90 = ssub.s32 %s24, %s38
      %p91 = scmp.eq.s32.totalorder %s90, 0
      %s93 = sadd.s32 %s92, 1
      %s94 = scalar_select %p91, %s92, %s93
      %p97 = pneg %p91
      %p98 = scmp.eq.s32.totalorder %s16, 1
      %p99 = por %p97, %p98
      %p100 = scmp.ne.s32.totalorder %s92, %s95
      %p101 = scmp.eq.s32.totalorder %s16, 0
      %p102 = por %p100, %p101
      %p103 = scmp.ne.s32.totalorder %s92, %s95
      %p104 = scmp.eq.s32.totalorder %s21, 1
      %p105 = por %p103, %p104
      %p106 = scmp.ne.s32.totalorder %s95, %s96
      %p107 = scmp.eq.s32.totalorder %s21, 0
      %p108 = por %p106, %p107
      %p109 = scmp.ne.s32.totalorder %s95, %s96
      %p110 = scmp.eq.s32.totalorder %s22, 1
      %p111 = por %p109, %p110
      %p113 = scmp.ne.s32.totalorder %s96, %s112
      %p114 = scmp.eq.s32.totalorder %s22, 0
      %p115 = por %p113, %p114
      %s116 = ssub.s32 %s23, %s42
      %s117 = ssub.s32 %s24, %s38
      %s118 = sor.u32 %s116, %s117
      %s119 = ssub.s32 %s25, %s34
      %s120 = sor.u32 %s118, %s119
      %p121 = scmp.eq.s32.totalorder %s120, 0
      %s123 = sadd.s32 %s122, 1
      %s124 = scalar_select %p121, %s122, %s123
      %p127 = pneg %p121
      %p128 = scmp.eq.s32.totalorder %s16, 1
      %p129 = por %p127, %p128
      %p130 = scmp.ne.s32.totalorder %s122, %s125
      %p131 = scmp.eq.s32.totalorder %s16, 0
      %p132 = por %p130, %p131
      %p133 = scmp.ne.s32.totalorder %s122, %s125
      %p134 = scmp.eq.s32.totalorder %s21, 1
      %p135 = por %p133, %p134
      %p136 = scmp.ne.s32.totalorder %s125, %s126
      %p137 = scmp.eq.s32.totalorder %s21, 0
      %p138 = por %p136, %p137
      %p139 = scmp.ne.s32.totalorder %s125, %s126
      %p140 = scmp.eq.s32.totalorder %s22, 1
      %p141 = por %p139, %p140
      %p143 = scmp.ne.s32.totalorder %s126, %s142
      %p144 = scmp.eq.s32.totalorder %s22, 0
      %p145 = por %p143, %p144
      %s146 = ssub.s32 %s23, %s42
      %s147 = ssub.s32 %s24, %s38
      %s148 = sor.u32 %s146, %s147
      %s149 = ssub.s32 %s25, %s34
      %s150 = sor.u32 %s148, %s149
      %p151 = scmp.eq.s32.totalorder %s150, 0
      %s153 = sadd.s32 %s152, 1
      %s154 = scalar_select %p151, %s152, %s153
      %p157 = pneg %p151
      %p158 = scmp.eq.s32.totalorder %s16, 1
      %p159 = por %p157, %p158
      %p160 = scmp.ne.s32.totalorder %s152, %s155
      %p161 = scmp.eq.s32.totalorder %s16, 0
      %p162 = por %p160, %p161
      %p163 = scmp.ne.s32.totalorder %s152, %s155
      %p164 = scmp.eq.s32.totalorder %s21, 1
      %p165 = por %p163, %p164
      %p166 = scmp.ne.s32.totalorder %s155, %s156
      %p167 = scmp.eq.s32.totalorder %s21, 0
      %p168 = por %p166, %p167
      %p169 = scmp.ne.s32.totalorder %s155, %s156
      %p170 = scmp.eq.s32.totalorder %s22, 1
      %p171 = por %p169, %p170
      %p173 = scmp.ne.s32.totalorder %s156, %s172
      %p174 = scmp.eq.s32.totalorder %s22, 0
      %p175 = por %p173, %p174
      %p176 = scmp.le.s32.totalorder 1, %s16
      %p177 = scmp.lt.s32.totalorder %s16, 3
      %p178 = pnand %p176, %p177
      %p179 = pneg %p178
      // Predicated region
      $region9: #{tpu_custom_call.1} parent=5 // pred_check
        _
      $region10: #{tpu_custom_call.1} parent=5 // pred_check_branch
        %181 = sbr.rel (%p178) target = $region12
      $region11: #{tpu_custom_call.1} parent=5 // pred_region
        %s182 = ssub.s32 %s16, 1
        // Predicated region
        $region13: #{tpu_custom_call.1} parent=11 // pred_check
          %p183 = pneg %p56
        $region14: #{tpu_custom_call.1} parent=11 // pred_check_branch
          %185 = sbr.rel (%p183) target = $region16
        $region15: #{tpu_custom_call.1} parent=11 // pred_region
          _
        $region16: #{tpu_custom_call.1} parent=11 // pred_fallthru
          _
        // Predicated region
        $region17: #{tpu_custom_call.1} parent=11 // pred_check
          %p186 = pneg %p82
        $region18: #{tpu_custom_call.1} parent=11 // pred_check_branch
          %188 = sbr.rel (%p186) target = $region20
        $region19: #{tpu_custom_call.1} parent=11 // pred_region
          %p189 = scmp.lt.s32.totalorder %s27, 0
          %s190 = scalar_select %p189, %s27, 0
          %s191 = smul.addr %s190, 8
          %s192 = scalar_lea.vmem %s1, %s191
        $region20: #{tpu_custom_call.1} parent=11 // pred_fallthru
          _
        // Predicated region
        $region21: #{tpu_custom_call.1} parent=11 // pred_check
          %p193 = pneg %p108
        $region22: #{tpu_custom_call.1} parent=11 // pred_check_branch
          %195 = sbr.rel (%p193) target = $region24
        $region23: #{tpu_custom_call.1} parent=11 // pred_region
          %p196 = scmp.lt.s32.totalorder %s27, 0
          %s197 = scalar_select %p196, %s27, 0
          %s198 = scalar_lea.vmem %s2, %s197
        $region24: #{tpu_custom_call.1} parent=11 // pred_fallthru
          _
      $region12: #{tpu_custom_call.1} parent=5 // pred_fallthru
        _
      %p199 = scmp.lt.s32.totalorder %s16, 2
      // Predicated region
      $region25: #{tpu_custom_call.1} parent=5 // pred_check
        %p200 = pneg %p199
      $region26: #{tpu_custom_call.1} parent=5 // pred_check_branch
        %202 = sbr.rel (%p200) target = $region28
      $region27: #{tpu_custom_call.1} parent=5 // pred_region
        // Predicated region
        $region29: #{tpu_custom_call.1} parent=27 // pred_check
          %p203 = pneg %p132
        $region30: #{tpu_custom_call.1} parent=27 // pred_check_branch
          %205 = sbr.rel (%p203) target = $region32
        $region31: #{tpu_custom_call.1} parent=27 // pred_region
          %s206 = sand.u32 %s122, 1
          %s207 = scalar_lea.sflag [#allocation4], %s206
          %s208 = sand.u32 %s122, 1
          %s209 = smul.addr %s208, 8
          %s210 = scalar_lea.vmem [#allocation3], %s209
          %s211 = smul.u32 2, %s25
          %s213 = ssub.s32 128, 128
          %214 = vsyncadd %s207, %s213
          %s215 = smul.addr %s24, 2
          %s216 = sadd.s32 %s211, %s215
          %s217 = smul.addr %s23, 2
          %s218 = sadd.s32 %s216, %s217
          %s219 = smul.addr %s218, 64
          %s220 = scalar_lea.hbm %s3, %s219
          %s222 = sshll.u32 %s210, 4
          %s223 = int_to_ptr.vmem [resolvable:$true] %s222
          %225 = dma.hbm_to_vmem [thread:$0]  %s220, 128, %s223, %s207
        $region32: #{tpu_custom_call.1} parent=27 // pred_fallthru
          _
      $region28: #{tpu_custom_call.1} parent=5 // pred_fallthru
        _
      %p226 = scmp.le.s32.totalorder 1, %s16
      %p227 = scmp.lt.s32.totalorder %s16, 3
      %p228 = pnand %p226, %p227
      %p229 = pneg %p228
      // Predicated region
      $region33: #{tpu_custom_call.1} parent=5 // pred_check
        _
      $region34: #{tpu_custom_call.1} parent=5 // pred_check_branch
        %231 = sbr.rel (%p228) target = $region36
      $region35: #{tpu_custom_call.1} parent=5 // pred_region
        %s232 = ssub.s32 %s16, 1
        %s233 = sand.u32 %s125, 1
        %s234 = scalar_lea.sflag [#allocation4], %s233
        %s235 = sand.u32 %s125, 1
        %s236 = smul.addr %s235, 8
        %s237 = scalar_lea.vmem [#allocation3], %s236
        // Predicated region
        $region37: #{tpu_custom_call.1} parent=35 // pred_check
          %p238 = pneg %p138
        $region38: #{tpu_custom_call.1} parent=35 // pred_check_branch
          %240 = sbr.rel (%p238) target = $region40
        $region39: #{tpu_custom_call.1} parent=35 // pred_region
          %241 = dma.done %s234, 128
        $region40: #{tpu_custom_call.1} parent=35 // pred_fallthru
          _
        %p242 = pneg %p56
        %p243 = pneg %p53
        %p244 = scmp.lt.s32.totalorder %s27, 0
        %s245 = scalar_select %p244, %s27, 0
        %s246 = smul.addr %s245, 8
        %s247 = scalar_lea.vmem %s1, %s246
        %p248 = pneg %p82
        %p249 = pneg %p79
        %p250 = scmp.lt.s32.totalorder %s27, 0
        %s251 = scalar_select %p250, %s27, 0
        %s252 = scalar_lea.vmem %s2, %s251
        %p253 = pneg %p108
        %p254 = pneg %p105
        %s255 = sand.u32 %s125, 1
        %s256 = scalar_lea.sflag [#allocation4], %s255
        %s257 = sand.u32 %s125, 1
        %s258 = smul.addr %s257, 8
        %s259 = scalar_lea.vmem [#allocation3], %s258
        %p260 = pneg %p138
        %p261 = pneg %p135
        %p262 = pneg %p168
        %p263 = pneg %p165
        %s264 = sand.u32 %s155, 1
        %s265 = scalar_lea.sflag [#allocation5], %s264
        %s266 = sand.u32 %s155, 1
        %s267 = smul.addr %s266, 8
        %s268 = scalar_lea.vmem [#allocation6], %s267
        %p269 = scmp.lt.s32.totalorder %s27, 0
        %s270 = scalar_select %p269, %s27, 0
        %s271 = smul.addr %s270, 8
        %s272 = scalar_lea.vmem %s1, %s271
        %p273 = scmp.lt.s32.totalorder %s27, 0
        %s274 = scalar_select %p273, %s27, 0
        %s275 = scalar_lea.vmem %s2, %s274
        %s276 = smul.u32 2, %s28
        %s277 = smul.u32 2, %s28
        %p278 = scmp.eq.s32.totalorder %s28, 0
        // Predicated region
        $region41: #{tpu_custom_call.1} parent=35 // pred_check
          %p279 = pneg %p278
        $region42: #{tpu_custom_call.1} parent=35 // pred_check_branch
          %281 = sbr.rel (%p279) target = $region44
        $region43: #{tpu_custom_call.1} parent=35 // pred_region
          %s282 = scalar_lea.vmem %s0, %s26
          %v283 = vld [vmem:[%s282] sm:$0x1]
          %v284 = vld [vmem:[%s272] sm:$0xff]
          %v285 = vld [vmem:[%s275] sm:$0x1]
          %vm286 = vcmask 64512
          %v288 = vsel %vm286, %v283, 0
          %290 = vmatprep.subr.mxu0 0.0
          %291 = vmatpush1.msra.mxu0 0.0
          %292 = vmatprep.subr.mxu0 0.0
          %293 = vmatpush1.msra.mxu0 0.0
          %294 = vmatprep.subr.mxu0 0.0
          %295 = vmatpush1.msra.mxu0 0.0
          %296 = vmatprep.subr.mxu0 0.0
          %297 = vmatpush1.msra.mxu0 0.0
          %298 = vmatprep.subr.mxu0 0.0
          %299 = vmatpush1.msra.mxu0 0.0
          %300 = vmatprep.subr.mxu0 0.0
          %301 = vmatpush1.msra.mxu0 0.0
          %302 = vmatprep.subr.mxu0 0.0
          %303 = vmatpush1.msra.mxu0 0.0
          %304 = vmatprep.subr.mxu0 0.0
          %305 = vmatpush1.msra.mxu0 0.0
          %306 = vmatprep.subr.mxu0 0.0
          %307 = vmatpush1.msra.mxu0 0.0
          %308 = vmatprep.subr.mxu0 0.0
          %309 = vmatpush1.msra.mxu0 0.0
          %310 = vmatprep.subr.mxu0 0.0
          %311 = vmatpush1.msra.mxu0 0.0
          %312 = vmatprep.subr.mxu0 0.0
          %313 = vmatpush1.msra.mxu0 0.0
          %314 = vmatprep.subr.mxu0 0.0
          %315 = vmatpush1.msra.mxu0 0.0
          %316 = vmatprep.subr.mxu0 0.0
          %317 = vmatpush1.msra.mxu0 0.0
          %318 = vmatprep.subr.mxu0 0.0
          %319 = vmatpush1.msra.mxu0 0.0
          %320 = vmatprep.subr.mxu0 0.0
          %321 = vmatpush1.msra.mxu0 %v284
          %322 = vmatprep.subr.mxu0 0.0
          %323 = vmatpush2.msra.mxu0 0.0
          %324 = vmatprep.subr.mxu0 0.0
          %325 = vmatpush2.msra.mxu0 0.0
          %326 = vmatprep.subr.mxu0 0.0
          %327 = vmatpush2.msra.mxu0 0.0
          %328 = vmatprep.subr.mxu0 0.0
          %329 = vmatpush2.msra.mxu0 0.0
          %330 = vmatprep.subr.mxu0 0.0
          %331 = vmatpush2.msra.mxu0 0.0
          %332 = vmatprep.subr.mxu0 0.0
          %333 = vmatpush2.msra.mxu0 0.0
          %334 = vmatprep.subr.mxu0 0.0
          %335 = vmatpush2.msra.mxu0 0.0
          %336 = vmatprep.subr.mxu0 0.0
          %337 = vmatpush2.msra.mxu0 0.0
          %338 = vmatprep.subr.mxu0 0.0
          %339 = vmatpush2.msra.mxu0 0.0
          %340 = vmatprep.subr.mxu0 0.0
          %341 = vmatpush2.msra.mxu0 0.0
          %342 = vmatprep.subr.mxu0 0.0
          %343 = vmatpush2.msra.mxu0 0.0
          %344 = vmatprep.subr.mxu0 0.0
          %345 = vmatpush2.msra.mxu0 0.0
          %346 = vmatprep.subr.mxu0 0.0
          %347 = vmatpush2.msra.mxu0 0.0
          %348 = vmatprep.subr.mxu0 0.0
          %349 = vmatpush2.msra.mxu0 0.0
          %350 = vmatprep.subr.mxu0 0.0
          %351 = vmatpush2.msra.mxu0 0.0
          %352 = vmatprep.subr.mxu0 0.0
          %353 = vmatpush2.msra.mxu0 0.0
          %354 = vmatprep.mubr.f32.mxu0 0.0
          %355 = vmatmul.mubr.f32.gmra.mxu0 %v288
          %v356 = vpop.f32.mrf.mxu0
          %v357 = vadd.f32 %v285, %v356
          %v358 = vpop.f32.mrf.mxu0
          %359 = vdwg.mxu0
          %v360 = vtanh.pop %v357
          %v361 = vadd.f32 %v360, 1.0
          %vm362 = vcmask 24576
          %363 = vst.msk [vmem:[#allocation2] sm:$0x1] %vm362, %v361
        $region44: #{tpu_custom_call.1} parent=35 // pred_fallthru
          _
        %v364 = vld [vmem:[#allocation2] sm:$0x1]
        %v365 = vlaneseq
        %v366 = vshrl.u32 %v365, 7
        %v367 = vsub.s32 0, %v366
        %v368 = vrot.slane %v364, %v367
        %370 = vbcast.lane.b32.xlu0 %v368, 256
        %v371 = vpop.permute.xlu0 %370
        %v372 = vld [vmem:[%s237] sm:$0xff]
        %v374 = vcombine.high %v372, %v372
        %v376 = vmul.f32 %v371, %v372
        %v377 = vmul.f32 %v371, %v374
        %v380 = vcombine.low %v376, %v377
        %382 = vst [vmem:[%s268] sm:$0xff] %v380
        %s383 = sand.u32 %s155, 1
        %s384 = scalar_lea.sflag [#allocation5], %s383
        %s385 = sand.u32 %s155, 1
        %s386 = smul.addr %s385, 8
        %s387 = scalar_lea.vmem [#allocation6], %s386
        // Predicated region
        $region45: #{tpu_custom_call.1} parent=35 // pred_check
          %p388 = pneg %p165
        $region46: #{tpu_custom_call.1} parent=35 // pred_check_branch
          %390 = sbr.rel (%p388) target = $region48
        $region47: #{tpu_custom_call.1} parent=35 // pred_region
          %s391 = smul.u32 2, %s28
          %s393 = ssub.s32 128, 128
          %394 = vsyncadd %s384, %s393
          %s395 = smul.addr %s27, 2
          %s396 = sadd.s32 %s391, %s395
          %s397 = smul.addr %s26, 2
          %s398 = sadd.s32 %s396, %s397
          %s399 = smul.addr %s398, 64
          %s400 = scalar_lea.hbm %s4, %s399
          %s402 = sshll.u32 %s387, 4
          %s403 = int_to_ptr.vmem [resolvable:$true] %s402
          %405 = dma.vmem_to_hbm [thread:$0]  %s403, 128, %s400, %s384
        $region48: #{tpu_custom_call.1} parent=35 // pred_fallthru
          _
      $region36: #{tpu_custom_call.1} parent=5 // pred_fallthru
        _
      %p406 = scmp.le.s32.totalorder 2, %s16
      // Predicated region
      $region49: #{tpu_custom_call.1} parent=5 // pred_check
        %p407 = pneg %p406
      $region50: #{tpu_custom_call.1} parent=5 // pred_check_branch
        %409 = sbr.rel (%p407) target = $region52
      $region51: #{tpu_custom_call.1} parent=5 // pred_region
        %s410 = ssub.s32 %s16, 2
        // Predicated region
        $region53: #{tpu_custom_call.1} parent=51 // pred_check
          %p411 = pneg %p171
        $region54: #{tpu_custom_call.1} parent=51 // pred_check_branch
          %413 = sbr.rel (%p411) target = $region56
        $region55: #{tpu_custom_call.1} parent=51 // pred_region
          %s414 = sand.u32 %s156, 1
          %s415 = scalar_lea.sflag [#allocation5], %s414
          %s416 = sand.u32 %s156, 1
          %s417 = smul.addr %s416, 8
          %s418 = scalar_lea.vmem [#allocation6], %s417
          %419 = dma.done %s415, 128
        $region56: #{tpu_custom_call.1} parent=51 // pred_fallthru
          _
      $region52: #{tpu_custom_call.1} parent=5 // pred_fallthru
        _
    $region6: #{tpu_custom_call.1} parent=1 // loop_footer
      %s20 = sadd.s32 1, %s16
    $region7: #{tpu_custom_call.1} parent=1 // loop_footer_branch
      %15 = sbr.rel target = $region3
    $region8: #{tpu_custom_call.1} parent=1 // loop_exit
      _
    %420 = vsyncpa [#allocation4], 1
    %s421 = scalar_lea.sflag [#allocation4], 1
    %422 = vsyncpa %s421, 1
    %423 = vsyncpa [#allocation5], 1
    %s424 = scalar_lea.sflag [#allocation5], 1
    %425 = vsyncpa %s424, 1

</llo_original>
